<compile_context>
chip_gen: v7x
topology: tpu7x:2x2x1
jax: 0.10.0
libtpu: 0.0.40
codegen_flags: <defaults>
</compile_context>

<pallas_src>
import functools
import math

import jax
import jax.numpy as jnp
import numpy as np
from jax import lax
from jax.experimental import pallas as pl
from jax.experimental.pallas import tpu as pltpu


def _round_up(x, m):
    return ((x + m - 1) // m) * m


# --------------------------------------------------------------------------
# Pallas kernel: one batch-tile of SAEncoder.forward
# --------------------------------------------------------------------------
def _sa_encoder_kernel(x_ref, w_ref, b_ref, o_ref, *, H, D, P, f_type,
                       approx_recip):
    """x_ref: (Bt, d_input); w_ref: (d_input, 3*P) fused [Wq|Wk|Wv] (each
    segment padded to P=round_up(H*D,128) lanes); b_ref: (1, 3*P) f32 bias;
    o_ref: (Bt, D) for 'avg' or (Bt, H*D) for 'concat'."""
    # One fused QKV projection (single MXU matmul, f32 accumulation).
    proj = jnp.dot(x_ref[...], w_ref[...],
                   preferred_element_type=jnp.float32) + b_ref[...]

    # Per-head views: q/k/v live in 128-aligned lane segments 0 / P / 2P.
    q = [proj[:, 0 * P + h * D: 0 * P + (h + 1) * D] for h in range(H)]
    k = [proj[:, 1 * P + h * D: 1 * P + (h + 1) * D] for h in range(H)]
    v = [jnp.maximum(proj[:, 2 * P + h * D: 2 * P + (h + 1) * D], 0.0)
         for h in range(H)]                                  # ReLU(v)

    inv_sqrt_d = 1.0 / math.sqrt(D)
    # score[i][j] = <q_i, k_j> / sqrt(D)  per row  -> (Bt, 1)
    score = [[jnp.sum(q[i] * k[j], axis=-1, keepdims=True) * inv_sqrt_d
              for j in range(H)] for i in range(H)]

    outs = []
    for i in range(H):
        # nn.Softmax() on the 2-D (H, H) score == softmax over dim=1 (over j).
        m = score[i][0]
        for j in range(1, H):
            m = jnp.maximum(m, score[i][j])
        e = [jnp.exp(score[i][j] - m) for j in range(H)]
        denom = e[0]
        for j in range(1, H):
            denom = denom + e[j]
        inv = pl.reciprocal(denom, approx=approx_recip)      # EUP slot
        o_i = (e[0] * inv) * v[0]
        for j in range(1, H):
            o_i = o_i + (e[j] * inv) * v[j]
        outs.append(o_i)                                     # (Bt, D)

    if f_type == 'avg':                                      # torch.mean(v, dim=0)
        acc = outs[0]
        for i in range(1, H):
            acc = acc + outs[i]
        o_ref[...] = acc * (1.0 / H)                         # one dense store
    else:                                                    # 'concat': view(-1, H*D)
        o_ref[...] = jnp.concatenate(outs, axis=-1)          # one dense store


# --------------------------------------------------------------------------
# Wrapper
# --------------------------------------------------------------------------
def _fuse_qkv_params(params, H, D, P, matmul_dtype):
    """Concatenate (and lane-pad) Wq|Wk|Wv and the biases wrapper-side."""
    wq, bq, wk, bk, wv, bv = params
    HD = H * D
    pad = lambda a: jnp.pad(a, ((0, 0), (0, P - HD)))
    w_all = jnp.concatenate([pad(wq), pad(wk), pad(wv)], axis=1)
    b_all = jnp.concatenate([pad(bq), pad(bk), pad(bv)], axis=1)
    return w_all.astype(matmul_dtype), b_all.astype(jnp.float32)


def sa_encoder_forward(x, params, *, n_head, d_model, f_type,
                       matmul_dtype=jnp.float32, block_b=128,
                       approx_recip=False):
    """Batched SAEncoder.forward.

    x: (d_input,) or (B, d_input) — each row is one call of the PyTorch module.
    params: (wq, bq, wk, bk, wv, bv) with weights stored as (d_input, H*D)
    (transposed w.r.t. PyTorch nn.Linear) and biases as (1, H*D).
    """
    H, D = n_head, d_model
    HD = H * D
    P = _round_up(HD, 128)                  # 128-aligned lane segment per q/k/v
    out_cols = D if f_type == 'avg' else HD

    single = (x.ndim == 1)
    x2 = x[None, :] if single else x
    B, d_input = x2.shape

    # Batch tiling: rows -> sublanes. Multiple of 16 keeps bf16 packing happy.
    block_b = max(16, _round_up(block_b, 16))
    Bt = min(block_b, max(16, _round_up(B, 16)))
    B_pad = _round_up(B, Bt)
    x_pad = jnp.pad(x2, ((0, B_pad - B), (0, 0))).astype(matmul_dtype)

    w_all, b_all = _fuse_qkv_params(params, H, D, P, matmul_dtype)

    kernel = functools.partial(_sa_encoder_kernel, H=H, D=D, P=P,
                               f_type=f_type, approx_recip=approx_recip)

    out = pl.pallas_call(
        kernel,
        out_shape=jax.ShapeDtypeStruct((B_pad, out_cols), jnp.float32),
        grid=(B_pad // Bt,),
        in_specs=[
            pl.BlockSpec((Bt, d_input), lambda i: (i, 0)),     # activations
            pl.BlockSpec((d_input, 3 * P), lambda i: (0, 0)),  # fused weights
            pl.BlockSpec((1, 3 * P), lambda i: (0, 0)),        # fused bias
        ],
        out_specs=pl.BlockSpec((Bt, out_cols), lambda i: (i, 0)),
        compiler_params=pltpu.CompilerParams(
            dimension_semantics=("parallel",)),  # shard batch tiles (v7x: 2 TCs)
    )(x_pad, w_all, b_all)

    out = out[:B]
    if single:                        # match PyTorch single-vector shapes
        return out[0] if f_type == 'avg' else out
    return out                        # (B, D) for 'avg' / (B, H*D) for 'concat'


# --------------------------------------------------------------------------
# FLOW_SSL forward (extractor='SA'): every agg_region_emb call of a training
# step is one row of the batched encoder kernel.
# --------------------------------------------------------------------------
def flow_ssl_forward(pickup_x, dropoff_x, pickup_params, dropoff_params, *,
                     n_head, d_model, n_pos, temp,
                     matmul_dtype=jnp.float32, approx_recip=False):
    """Row 0 = base region, rows [1, 1+n_pos) = positives, rest = negatives."""
    pick = sa_encoder_forward(pickup_x, pickup_params, n_head=n_head,
                              d_model=d_model, f_type='avg',
                              matmul_dtype=matmul_dtype,
                              approx_recip=approx_recip)
    drop = sa_encoder_forward(dropoff_x, dropoff_params, n_head=n_head,
                              d_model=d_model, f_type='avg',
                              matmul_dtype=matmul_dtype,
                              approx_recip=approx_recip)
    region_emb = (pick + drop) * 0.5                     # (B, d_model)

    base = region_emb[0]
    pos = region_emb[1:1 + n_pos]
    neg = region_emb[1 + n_pos:]

    # TODO(synk): the contrastive loss below is a handful of tiny dot products
    # plus a log-softmax over ~a dozen scalars; kept in plain JAX since a
    # Pallas kernel would be pure overhead at this size.
    pos_scores = jnp.dot(pos, base)
    neg_scores = jnp.dot(neg, base)
    scores = jnp.concatenate([pos_scores, neg_scores]) / temp
    labels = jnp.concatenate([jnp.ones_like(pos_scores),
                              jnp.zeros_like(neg_scores)])
    loss = -(jax.nn.log_softmax(scores, axis=0) * labels).sum() / labels.sum()
    return loss, base, neg


# --------------------------------------------------------------------------
# Pure-JAX references (mirror the PyTorch forward)
# --------------------------------------------------------------------------
def _sa_encoder_reference(x, params, *, n_head, d_model, f_type,
                          matmul_dtype=jnp.float32):
    wq, bq, wk, bk, wv, bv = params
    H, D = n_head, d_model
    hi = lax.Precision.HIGHEST
    xd = x.astype(matmul_dtype)

    def proj(w, b):
        return jnp.dot(xd, w.astype(matmul_dtype), precision=hi,
                       preferred_element_type=jnp.float32) + b

    q = proj(wq, bq).reshape(-1, H, D)
    k = proj(wk, bk).reshape(-1, H, D)
    v = proj(wv, bv).reshape(-1, H, D)
    score = jnp.einsum('bhd,bgd->bhg', q, k, precision=hi) / math.sqrt(D)
    attn = jax.nn.softmax(score, axis=-1)
    out = jnp.einsum('bhg,bgd->bhd', attn, jnp.maximum(v, 0.0), precision=hi)
    if f_type == 'avg':
        return jnp.mean(out, axis=1)
    return out.reshape(-1, H * D)


def _flow_ssl_reference(pickup_x, dropoff_x, pickup_params, dropoff_params, *,
                        n_head, d_model, n_pos, temp):
    hi = lax.Precision.HIGHEST
    pick = _sa_encoder_reference(pickup_x, pickup_params, n_head=n_head,
                                 d_model=d_model, f_type='avg')
    drop = _sa_encoder_reference(dropoff_x, dropoff_params, n_head=n_head,
                                 d_model=d_model, f_type='avg')
    emb = (pick + drop) * 0.5
    base, pos, neg = emb[0], emb[1:1 + n_pos], emb[1 + n_pos:]
    pos_scores = jnp.dot(pos, base, precision=hi)
    neg_scores = jnp.dot(neg, base, precision=hi)
    scores = jnp.concatenate([pos_scores, neg_scores]) / temp
    labels = jnp.concatenate([jnp.ones_like(pos_scores),
                              jnp.zeros_like(neg_scores)])
    loss = -(jax.nn.log_softmax(scores, axis=0) * labels).sum() / labels.sum()
    return loss, base, neg


# --------------------------------------------------------------------------
if __name__ == "__main__":
    # FLOW_SSL SA config: SAEncoder(d_input=num_regions, d_model=16, n_head=3, 'avg')
    d_input, d_model, n_head = 64, 16, 3   # num_regions kept small for the demo
    time_zone = 4
    n_pos, n_neg = 1, 5
    temp = 0.1
    B = 1 + n_pos + n_neg                  # base + positives + negatives

    key = jax.random.PRNGKey(0)
    kp, kd, kxp, kxd = jax.random.split(key, 4)

    def make_sa_params(k):
        ks = jax.random.split(k, 6)
        bound = 1.0 / math.sqrt(d_input)   # nn.Linear default init range
        w = lambda kk: jax.random.uniform(kk, (d_input, n_head * d_model),
                                          minval=-bound, maxval=bound,
                                          dtype=jnp.float32)
        b = lambda kk: jax.random.uniform(kk, (1, n_head * d_model),
                                          minval=-bound, maxval=bound,
                                          dtype=jnp.float32)
        return (w(ks[0]), b(ks[1]), w(ks[2]), b(ks[3]), w(ks[4]), b(ks[5]))

    pickup_params = make_sa_params(kp)
    dropoff_params = make_sa_params(kd)

    # Flow matrices (time_zone, num_regions); agg_region_emb sums over time.
    pickup_mats = jax.random.uniform(kxp, (B, time_zone, d_input), dtype=jnp.float32)
    dropoff_mats = jax.random.uniform(kxd, (B, time_zone, d_input), dtype=jnp.float32)
    pickup_x = jnp.sum(pickup_mats, axis=1)    # (B, d_input)
    dropoff_x = jnp.sum(dropoff_mats, axis=1)

    ok = True

    # 1) SAEncoder kernel (f32 operands) vs reference, both fusion types.
    for f_type in ("avg", "concat"):
        y = jax.block_until_ready(
            sa_encoder_forward(pickup_x, pickup_params, n_head=n_head,
                               d_model=d_model, f_type=f_type))
        y_ref = _sa_encoder_reference(pickup_x, pickup_params, n_head=n_head,
                                      d_model=d_model, f_type=f_type)
        ok = ok and np.allclose(np.asarray(y), np.asarray(y_ref),
                                rtol=1e-4, atol=1e-4)

    # 2) bf16 MXU-operand path (v6e/v7x) + approx reciprocal, vs bf16-aware ref.
    y16 = jax.block_until_ready(
        sa_encoder_forward(pickup_x, pickup_params, n_head=n_head,
                           d_model=d_model, f_type="avg",
                           matmul_dtype=jnp.bfloat16, approx_recip=True))
    y16_ref = _sa_encoder_reference(pickup_x, pickup_params, n_head=n_head,
                                    d_model=d_model, f_type="avg",
                                    matmul_dtype=jnp.bfloat16)
    ok = ok and np.allclose(np.asarray(y16), np.asarray(y16_ref),
                            rtol=1e-2, atol=1e-2)

    # 3) Full FLOW_SSL forward (loss + base / negative embeddings).
    loss, base, neg = flow_ssl_forward(pickup_x, dropoff_x, pickup_params,
                                       dropoff_params, n_head=n_head,
                                       d_model=d_model, n_pos=n_pos, temp=temp)
    loss = jax.block_until_ready(loss)
    loss_ref, base_ref, neg_ref = _flow_ssl_reference(
        pickup_x, dropoff_x, pickup_params, dropoff_params,
        n_head=n_head, d_model=d_model, n_pos=n_pos, temp=temp)
    ok = ok and np.allclose(np.asarray(loss), np.asarray(loss_ref),
                            rtol=1e-4, atol=1e-4)
    ok = ok and np.allclose(np.asarray(base), np.asarray(base_ref),
                            rtol=1e-4, atol=1e-4)
    ok = ok and np.allclose(np.asarray(neg), np.asarray(neg_ref),
                            rtol=1e-4, atol=1e-4)

    print("KERNEL_OK" if ok else "MISMATCH")
</pallas_src>

<mosaic_0001>
module attributes {stable_mosaic.version = 11 : i64} {
  func.func @_sa_encoder_kernel(%arg0: i32, %arg1: memref<16x64xf32, #tpu.memory_space<vmem>>, %arg2: memref<64x384xf32, #tpu.memory_space<vmem>>, %arg3: memref<1x384xf32, #tpu.memory_space<vmem>>, %arg4: memref<16x16xf32, #tpu.memory_space<vmem>>) attributes {dimension_semantics = [#tpu.dimension_semantics<parallel>], iteration_bounds = array<i64: 1>, scalar_prefetch = 0 : i64, scratch_operands = 0 : i64, tpu.core_type = #tpu.core_type<tc>, window_params = [{transform_indices = @transform_0, window_bounds = array<i64: 16, 64>}, {pipeline_mode = #tpu.pipeline_mode<synchronous>, transform_indices = @transform_1, window_bounds = array<i64: 64, 384>}, {pipeline_mode = #tpu.pipeline_mode<synchronous>, transform_indices = @transform_2, window_bounds = array<i64: 1, 384>}, {transform_indices = @transform_3, window_bounds = array<i64: 16, 16>}]} {
    %c0 = arith.constant 0 : index
    %c0_0 = arith.constant 0 : index
    %0 = vector.load %arg1[%c0, %c0_0] : memref<16x64xf32, #tpu.memory_space<vmem>>, vector<16x64xf32>
    %c0_1 = arith.constant 0 : index
    %c0_2 = arith.constant 0 : index
    %1 = vector.load %arg2[%c0_1, %c0_2] : memref<64x384xf32, #tpu.memory_space<vmem>>, vector<64x384xf32>
    %cst = arith.constant dense<0.000000e+00> : vector<16x384xf32>
    %2 = tpu.matmul %0, %1, %cst {dimension_numbers = #tpu.dot_dimension_numbers<[1], [0], [0], [1], [0, 0, 1, 1], [], []>} : vector<16x64xf32>, vector<64x384xf32>, vector<16x384xf32> -> vector<16x384xf32>
    %c0_3 = arith.constant 0 : index
    %c0_4 = arith.constant 0 : index
    %3 = vector.load %arg3[%c0_3, %c0_4] : memref<1x384xf32, #tpu.memory_space<vmem>>, vector<1x384xf32>
    %4 = vector.broadcast %3 : vector<1x384xf32> to vector<16x384xf32>
    %5 = arith.addf %2, %4 : vector<16x384xf32>
    %6 = vector.extract_strided_slice %5 {offsets = [0, 0], sizes = [16, 16], strides = [1, 1]} : vector<16x384xf32> to vector<16x16xf32>
    %7 = vector.extract_strided_slice %5 {offsets = [0, 16], sizes = [16, 16], strides = [1, 1]} : vector<16x384xf32> to vector<16x16xf32>
    %8 = vector.extract_strided_slice %5 {offsets = [0, 32], sizes = [16, 16], strides = [1, 1]} : vector<16x384xf32> to vector<16x16xf32>
    %9 = vector.extract_strided_slice %5 {offsets = [0, 128], sizes = [16, 16], strides = [1, 1]} : vector<16x384xf32> to vector<16x16xf32>
    %10 = vector.extract_strided_slice %5 {offsets = [0, 144], sizes = [16, 16], strides = [1, 1]} : vector<16x384xf32> to vector<16x16xf32>
    %11 = vector.extract_strided_slice %5 {offsets = [0, 160], sizes = [16, 16], strides = [1, 1]} : vector<16x384xf32> to vector<16x16xf32>
    %12 = vector.extract_strided_slice %5 {offsets = [0, 256], sizes = [16, 16], strides = [1, 1]} : vector<16x384xf32> to vector<16x16xf32>
    %cst_5 = arith.constant 0.000000e+00 : f32
    %13 = vector.broadcast %cst_5 : f32 to vector<16x16xf32>
    %14 = arith.maximumf %12, %13 : vector<16x16xf32>
    %15 = vector.extract_strided_slice %5 {offsets = [0, 272], sizes = [16, 16], strides = [1, 1]} : vector<16x384xf32> to vector<16x16xf32>
    %cst_6 = arith.constant 0.000000e+00 : f32
    %16 = vector.broadcast %cst_6 : f32 to vector<16x16xf32>
    %17 = arith.maximumf %15, %16 : vector<16x16xf32>
    %18 = vector.extract_strided_slice %5 {offsets = [0, 288], sizes = [16, 16], strides = [1, 1]} : vector<16x384xf32> to vector<16x16xf32>
    %cst_7 = arith.constant 0.000000e+00 : f32
    %19 = vector.broadcast %cst_7 : f32 to vector<16x16xf32>
    %20 = arith.maximumf %18, %19 : vector<16x16xf32>
    %21 = arith.mulf %6, %9 : vector<16x16xf32>
    %cst_8 = arith.constant dense<0.000000e+00> : vector<16xf32>
    %22 = vector.multi_reduction <add>, %21, %cst_8 [1] : vector<16x16xf32> to vector<16xf32>
    %23 = vector.shape_cast %22 : vector<16xf32> to vector<16x1xf32>
    %cst_9 = arith.constant 2.500000e-01 : f32
    %24 = vector.broadcast %cst_9 : f32 to vector<16x1xf32>
    %25 = arith.mulf %23, %24 : vector<16x1xf32>
    %26 = arith.mulf %6, %10 : vector<16x16xf32>
    %cst_10 = arith.constant dense<0.000000e+00> : vector<16xf32>
    %27 = vector.multi_reduction <add>, %26, %cst_10 [1] : vector<16x16xf32> to vector<16xf32>
    %28 = vector.shape_cast %27 : vector<16xf32> to vector<16x1xf32>
    %cst_11 = arith.constant 2.500000e-01 : f32
    %29 = vector.broadcast %cst_11 : f32 to vector<16x1xf32>
    %30 = arith.mulf %28, %29 : vector<16x1xf32>
    %31 = arith.mulf %6, %11 : vector<16x16xf32>
    %cst_12 = arith.constant dense<0.000000e+00> : vector<16xf32>
    %32 = vector.multi_reduction <add>, %31, %cst_12 [1] : vector<16x16xf32> to vector<16xf32>
    %33 = vector.shape_cast %32 : vector<16xf32> to vector<16x1xf32>
    %cst_13 = arith.constant 2.500000e-01 : f32
    %34 = vector.broadcast %cst_13 : f32 to vector<16x1xf32>
    %35 = arith.mulf %33, %34 : vector<16x1xf32>
    %36 = arith.mulf %7, %9 : vector<16x16xf32>
    %cst_14 = arith.constant dense<0.000000e+00> : vector<16xf32>
    %37 = vector.multi_reduction <add>, %36, %cst_14 [1] : vector<16x16xf32> to vector<16xf32>
    %38 = vector.shape_cast %37 : vector<16xf32> to vector<16x1xf32>
    %cst_15 = arith.constant 2.500000e-01 : f32
    %39 = vector.broadcast %cst_15 : f32 to vector<16x1xf32>
    %40 = arith.mulf %38, %39 : vector<16x1xf32>
    %41 = arith.mulf %7, %10 : vector<16x16xf32>
    %cst_16 = arith.constant dense<0.000000e+00> : vector<16xf32>
    %42 = vector.multi_reduction <add>, %41, %cst_16 [1] : vector<16x16xf32> to vector<16xf32>
    %43 = vector.shape_cast %42 : vector<16xf32> to vector<16x1xf32>
    %cst_17 = arith.constant 2.500000e-01 : f32
    %44 = vector.broadcast %cst_17 : f32 to vector<16x1xf32>
    %45 = arith.mulf %43, %44 : vector<16x1xf32>
    %46 = arith.mulf %7, %11 : vector<16x16xf32>
    %cst_18 = arith.constant dense<0.000000e+00> : vector<16xf32>
    %47 = vector.multi_reduction <add>, %46, %cst_18 [1] : vector<16x16xf32> to vector<16xf32>
    %48 = vector.shape_cast %47 : vector<16xf32> to vector<16x1xf32>
    %cst_19 = arith.constant 2.500000e-01 : f32
    %49 = vector.broadcast %cst_19 : f32 to vector<16x1xf32>
    %50 = arith.mulf %48, %49 : vector<16x1xf32>
    %51 = arith.mulf %8, %9 : vector<16x16xf32>
    %cst_20 = arith.constant dense<0.000000e+00> : vector<16xf32>
    %52 = vector.multi_reduction <add>, %51, %cst_20 [1] : vector<16x16xf32> to vector<16xf32>
    %53 = vector.shape_cast %52 : vector<16xf32> to vector<16x1xf32>
    %cst_21 = arith.constant 2.500000e-01 : f32
    %54 = vector.broadcast %cst_21 : f32 to vector<16x1xf32>
    %55 = arith.mulf %53, %54 : vector<16x1xf32>
    %56 = arith.mulf %8, %10 : vector<16x16xf32>
    %cst_22 = arith.constant dense<0.000000e+00> : vector<16xf32>
    %57 = vector.multi_reduction <add>, %56, %cst_22 [1] : vector<16x16xf32> to vector<16xf32>
    %58 = vector.shape_cast %57 : vector<16xf32> to vector<16x1xf32>
    %cst_23 = arith.constant 2.500000e-01 : f32
    %59 = vector.broadcast %cst_23 : f32 to vector<16x1xf32>
    %60 = arith.mulf %58, %59 : vector<16x1xf32>
    %61 = arith.mulf %8, %11 : vector<16x16xf32>
    %cst_24 = arith.constant dense<0.000000e+00> : vector<16xf32>
    %62 = vector.multi_reduction <add>, %61, %cst_24 [1] : vector<16x16xf32> to vector<16xf32>
    %63 = vector.shape_cast %62 : vector<16xf32> to vector<16x1xf32>
    %cst_25 = arith.constant 2.500000e-01 : f32
    %64 = vector.broadcast %cst_25 : f32 to vector<16x1xf32>
    %65 = arith.mulf %63, %64 : vector<16x1xf32>
    %66 = arith.maximumf %25, %30 : vector<16x1xf32>
    %67 = arith.maximumf %66, %35 : vector<16x1xf32>
    %68 = arith.subf %25, %67 : vector<16x1xf32>
    %69 = math.exp %68 : vector<16x1xf32>
    %70 = arith.subf %30, %67 : vector<16x1xf32>
    %71 = math.exp %70 : vector<16x1xf32>
    %72 = arith.subf %35, %67 : vector<16x1xf32>
    %73 = math.exp %72 : vector<16x1xf32>
    %74 = arith.addf %69, %71 : vector<16x1xf32>
    %75 = arith.addf %74, %73 : vector<16x1xf32>
    %76 = tpu.reciprocal %75 : vector<16x1xf32> -> vector<16x1xf32>
    %77 = arith.mulf %69, %76 : vector<16x1xf32>
    %78 = vector.broadcast %77 : vector<16x1xf32> to vector<16x16xf32>
    %79 = arith.mulf %78, %14 : vector<16x16xf32>
    %80 = arith.mulf %71, %76 : vector<16x1xf32>
    %81 = vector.broadcast %80 : vector<16x1xf32> to vector<16x16xf32>
    %82 = arith.mulf %81, %17 : vector<16x16xf32>
    %83 = arith.addf %79, %82 : vector<16x16xf32>
    %84 = arith.mulf %73, %76 : vector<16x1xf32>
    %85 = vector.broadcast %84 : vector<16x1xf32> to vector<16x16xf32>
    %86 = arith.mulf %85, %20 : vector<16x16xf32>
    %87 = arith.addf %83, %86 : vector<16x16xf32>
    %88 = arith.maximumf %40, %45 : vector<16x1xf32>
    %89 = arith.maximumf %88, %50 : vector<16x1xf32>
    %90 = arith.subf %40, %89 : vector<16x1xf32>
    %91 = math.exp %90 : vector<16x1xf32>
    %92 = arith.subf %45, %89 : vector<16x1xf32>
    %93 = math.exp %92 : vector<16x1xf32>
    %94 = arith.subf %50, %89 : vector<16x1xf32>
    %95 = math.exp %94 : vector<16x1xf32>
    %96 = arith.addf %91, %93 : vector<16x1xf32>
    %97 = arith.addf %96, %95 : vector<16x1xf32>
    %98 = tpu.reciprocal %97 : vector<16x1xf32> -> vector<16x1xf32>
    %99 = arith.mulf %91, %98 : vector<16x1xf32>
    %100 = vector.broadcast %99 : vector<16x1xf32> to vector<16x16xf32>
    %101 = arith.mulf %100, %14 : vector<16x16xf32>
    %102 = arith.mulf %93, %98 : vector<16x1xf32>
    %103 = vector.broadcast %102 : vector<16x1xf32> to vector<16x16xf32>
    %104 = arith.mulf %103, %17 : vector<16x16xf32>
    %105 = arith.addf %101, %104 : vector<16x16xf32>
    %106 = arith.mulf %95, %98 : vector<16x1xf32>
    %107 = vector.broadcast %106 : vector<16x1xf32> to vector<16x16xf32>
    %108 = arith.mulf %107, %20 : vector<16x16xf32>
    %109 = arith.addf %105, %108 : vector<16x16xf32>
    %110 = arith.maximumf %55, %60 : vector<16x1xf32>
    %111 = arith.maximumf %110, %65 : vector<16x1xf32>
    %112 = arith.subf %55, %111 : vector<16x1xf32>
    %113 = math.exp %112 : vector<16x1xf32>
    %114 = arith.subf %60, %111 : vector<16x1xf32>
    %115 = math.exp %114 : vector<16x1xf32>
    %116 = arith.subf %65, %111 : vector<16x1xf32>
    %117 = math.exp %116 : vector<16x1xf32>
    %118 = arith.addf %113, %115 : vector<16x1xf32>
    %119 = arith.addf %118, %117 : vector<16x1xf32>
    %120 = tpu.reciprocal %119 : vector<16x1xf32> -> vector<16x1xf32>
    %121 = arith.mulf %113, %120 : vector<16x1xf32>
    %122 = vector.broadcast %121 : vector<16x1xf32> to vector<16x16xf32>
    %123 = arith.mulf %122, %14 : vector<16x16xf32>
    %124 = arith.mulf %115, %120 : vector<16x1xf32>
    %125 = vector.broadcast %124 : vector<16x1xf32> to vector<16x16xf32>
    %126 = arith.mulf %125, %17 : vector<16x16xf32>
    %127 = arith.addf %123, %126 : vector<16x16xf32>
    %128 = arith.mulf %117, %120 : vector<16x1xf32>
    %129 = vector.broadcast %128 : vector<16x1xf32> to vector<16x16xf32>
    %130 = arith.mulf %129, %20 : vector<16x16xf32>
    %131 = arith.addf %127, %130 : vector<16x16xf32>
    %132 = arith.addf %87, %109 : vector<16x16xf32>
    %133 = arith.addf %132, %131 : vector<16x16xf32>
    %cst_26 = arith.constant 0.333333343 : f32
    %134 = vector.broadcast %cst_26 : f32 to vector<16x16xf32>
    %135 = arith.mulf %133, %134 : vector<16x16xf32>
    %c0_27 = arith.constant 0 : index
    %c0_28 = arith.constant 0 : index
    %136 = vector.load %arg4[%c0_27, %c0_28] : memref<16x16xf32, #tpu.memory_space<vmem>>, vector<16x16xf32>
    tpu.vector_store %arg4[%c0_27, %c0_28], %135 {strides = array<i32>} : memref<16x16xf32, #tpu.memory_space<vmem>>, vector<16x16xf32>,
    return
  }
  func.func @transform_0(%arg0: i32) -> (i32, i32) {
    %c0_i32 = arith.constant 0 : i32
    %c0_i32_0 = arith.constant 0 : i32
    return %arg0, %c0_i32 : i32, i32
  }
  func.func @transform_1(%arg0: i32) -> (i32, i32) {
    %c0_i32 = arith.constant 0 : i32
    %c0_i32_0 = arith.constant 0 : i32
    %c0_i32_1 = arith.constant 0 : i32
    return %c0_i32, %c0_i32_0 : i32, i32
  }
  func.func @transform_2(%arg0: i32) -> (i32, i32) {
    %c0_i32 = arith.constant 0 : i32
    %c0_i32_0 = arith.constant 0 : i32
    %c0_i32_1 = arith.constant 0 : i32
    return %c0_i32, %c0_i32_0 : i32, i32
  }
  func.func @transform_3(%arg0: i32) -> (i32, i32) {
    %c0_i32 = arith.constant 0 : i32
    %c0_i32_0 = arith.constant 0 : i32
    return %arg0, %c0_i32 : i32, i32
  }
}

</mosaic_0001>

<llo_original>
// kernel: tpu_custom_call.1
$region0: #{tpu_custom_call.1}
  #allocation0 [shape = 'u32[]', space=smem, size = 0x4, offset = 0x4, fixed_abs, tag = 'smem constant byte address 0x4 - core index']
  #allocation1 [shape = 'u32[144,128]{1,0:T(1,128)}', space=vmem, size = 0x12000, scoped, tag = 'internal scratch']
  %s0 = inlined_call_operand.hbm [shape: f32[16,64], index: 0, kind: input, shape index: {}]
  %s1 = inlined_call_operand.hbm [shape: f32[64,384], index: 1, kind: input, shape index: {}]
  %s2 = inlined_call_operand.vmem [shape: f32[1,384], index: 2, kind: input, shape index: {}]
  %s3 = inlined_call_operand.hbm [shape: f32[16,16], index: 3, kind: output, shape index: {}]
  %s4 = sld [smem:[#allocation0]]
  $region30: #{tpu_custom_call.1} parent=0
    _
  %s6 = ssub.s32 1, %s4
  %s7 = scalar_select 0, %s6, %s4
  $region1: #{tpu_custom_call.1} parent=0
    #allocation2 [shape = 'u8[8192]{0}', space=vmem, size = 0x2000, scoped, tag = 'input window, operand 0, single buffered']
    #allocation3 [shape = 's32[1]{0}', space=sflag, size = 0x4, scoped, tag = 'scoped memory for tpu_custom_call.1']
    #allocation4 [shape = 's32[1]{0}', space=sflag, size = 0x4, scoped, tag = 'scoped memory for tpu_custom_call.1']
    #allocation5 [shape = 'u8[98304]{0}', space=vmem, size = 0x18000, scoped, tag = 'input window, operand 1, single buffered']
    #allocation6 [shape = 's32[1]{0}', space=sflag, size = 0x4, scoped, tag = 'scoped memory for tpu_custom_call.1']
    #allocation7 [shape = 'u8[8192]{0}', space=vmem, size = 0x2000, scoped, tag = 'output window, operand 0, single buffered']
    %8 = vsyncpa [#allocation3], 0
    %9 = vsyncpa [#allocation6], 0
    %10 = vsyncpa [#allocation4], 0
    // Predicated region
    $region2: #{tpu_custom_call.1} parent=1 // pred_check
      _
    $region3: #{tpu_custom_call.1} parent=1 // pred_check_branch
      %12 = sbr.rel (0) target = $region5
    $region4: #{tpu_custom_call.1} parent=1 // pred_region
      %s14 = ssub.s32 256, 256
      %15 = vsyncadd [#allocation3], %s14
      %s16 = sshll.u32 [#allocation2], 4
      %s17 = int_to_ptr.vmem [resolvable:$true] %s16
      %22 = dma.hbm_to_vmem [thread:$0]  %s0, 256, %s17, [#allocation3], 128, 128, 8
    $region5: #{tpu_custom_call.1} parent=1 // pred_fallthru
      _
    // Predicated region
    $region6: #{tpu_custom_call.1} parent=1 // pred_check
      _
    $region7: #{tpu_custom_call.1} parent=1 // pred_check_branch
      %24 = sbr.rel (0) target = $region9
    $region8: #{tpu_custom_call.1} parent=1 // pred_region
      %s26 = ssub.s32 3072, 3072
      %27 = vsyncadd [#allocation6], %s26
      %s28 = sshll.u32 [#allocation5], 4
      %s29 = int_to_ptr.vmem [resolvable:$true] %s28
      %34 = dma.hbm_to_vmem [thread:$0]  %s1, 3072, %s29, [#allocation6], 384, 384, 24
    $region9: #{tpu_custom_call.1} parent=1 // pred_fallthru
      _
    // Predicated region
    $region10: #{tpu_custom_call.1} parent=1 // pred_check
      _
    $region11: #{tpu_custom_call.1} parent=1 // pred_check_branch
      %36 = sbr.rel (0) target = $region13
    $region12: #{tpu_custom_call.1} parent=1 // pred_region
      _
    $region13: #{tpu_custom_call.1} parent=1 // pred_fallthru
      _
    // Predicated region
    $region14: #{tpu_custom_call.1} parent=1 // pred_check
      _
    $region15: #{tpu_custom_call.1} parent=1 // pred_check_branch
      %38 = sbr.rel (0) target = $region17
    $region16: #{tpu_custom_call.1} parent=1 // pred_region
      %39 = dma.done [#allocation3], 256
    $region17: #{tpu_custom_call.1} parent=1 // pred_fallthru
      _
    // Predicated region
    $region18: #{tpu_custom_call.1} parent=1 // pred_check
      _
    $region19: #{tpu_custom_call.1} parent=1 // pred_check_branch
      %41 = sbr.rel (0) target = $region21
    $region20: #{tpu_custom_call.1} parent=1 // pred_region
      %42 = dma.done [#allocation6], 3072
    $region21: #{tpu_custom_call.1} parent=1 // pred_fallthru
      _
    %v43 = vld [vmem:[#allocation2] sm:$0xff]
    %v44 = vld [vmem:[#allocation2 + $0x8] sm:$0xff]
    %v45 = vld [vmem:[#allocation5] sm:$0xff]
    %v46 = vld [vmem:[#allocation5 + $0x8] sm:$0xff]
    %v47 = vld [vmem:[#allocation5 + $0x10] sm:$0xff]
    %v48 = vld [vmem:[#allocation5 + $0x18] sm:$0xff]
    %v49 = vld [vmem:[#allocation5 + $0x20] sm:$0xff]
    %v50 = vld [vmem:[#allocation5 + $0x28] sm:$0xff]
    %v51 = vld [vmem:[#allocation5 + $0x30] sm:$0xff]
    %v52 = vld [vmem:[#allocation5 + $0x38] sm:$0xff]
    %v53 = vld [vmem:[#allocation5 + $0x40] sm:$0xff]
    %v54 = vld [vmem:[#allocation5 + $0x48] sm:$0xff]
    %v55 = vld [vmem:[#allocation5 + $0x50] sm:$0xff]
    %v56 = vld [vmem:[#allocation5 + $0x58] sm:$0xff]
    %v57 = vld [vmem:[#allocation5 + $0x60] sm:$0xff]
    %v58 = vld [vmem:[#allocation5 + $0x68] sm:$0xff]
    %v59 = vld [vmem:[#allocation5 + $0x70] sm:$0xff]
    %v60 = vld [vmem:[#allocation5 + $0x78] sm:$0xff]
    %v61 = vld [vmem:[#allocation5 + $0x80] sm:$0xff]
    %v62 = vld [vmem:[#allocation5 + $0x88] sm:$0xff]
    %v63 = vld [vmem:[#allocation5 + $0x90] sm:$0xff]
    %v64 = vld [vmem:[#allocation5 + $0x98] sm:$0xff]
    %v65 = vld [vmem:[#allocation5 + $0xa0] sm:$0xff]
    %v66 = vld [vmem:[#allocation5 + $0xa8] sm:$0xff]
    %v67 = vld [vmem:[#allocation5 + $0xb0] sm:$0xff]
    %v68 = vld [vmem:[#allocation5 + $0xb8] sm:$0xff]
    %v69 = vld [vmem:[%s2] sm:$0x7]
    %v71 = vlaneseq
    %v72 = vshrl.u32 %v71, 7
    %v73 = vsub.s32 0, %v72
    %v74 = vrot.slane %v69, %v73
    %v75 = vlaneseq
    %v76 = vshrl.u32 %v75, 7
    %v77 = vsub.s32 1, %v76
    %v78 = vrot.slane %v69, %v77
    %v79 = vlaneseq
    %v80 = vshrl.u32 %v79, 7
    %v81 = vsub.s32 2, %v80
    %v82 = vrot.slane %v69, %v81
    %vm86 = vcmask 523264
    %v88 = vsel %vm86, %v43, 0
    %v91 = vsel %vm86, %v44, 0
    %93 = vmatprep.subr.mxu0 %v46
    %94 = vmatpush1.msra.mxu0 %v45
    %95 = vmatprep.subr.mxu0 %v49
    %96 = vmatpush1.msra.mxu0 %v48
    %97 = vmatprep.subr.mxu0 %v52
    %98 = vmatpush1.msra.mxu0 %v51
    %99 = vmatprep.subr.mxu0 %v55
    %100 = vmatpush1.msra.mxu0 %v54
    %101 = vmatprep.subr.mxu0 %v58
    %102 = vmatpush1.msra.mxu0 %v57
    %103 = vmatprep.subr.mxu0 %v61
    %104 = vmatpush1.msra.mxu0 %v60
    %105 = vmatprep.subr.mxu0 %v64
    %106 = vmatpush1.msra.mxu0 %v63
    %107 = vmatprep.subr.mxu0 %v67
    %108 = vmatpush1.msra.mxu0 %v66
    %109 = vmatprep.subr.mxu0 0.0
    %110 = vmatpush1.msra.mxu0 0.0
    %111 = vmatprep.subr.mxu0 0.0
    %112 = vmatpush1.msra.mxu0 0.0
    %113 = vmatprep.subr.mxu0 0.0
    %114 = vmatpush1.msra.mxu0 0.0
    %115 = vmatprep.subr.mxu0 0.0
    %116 = vmatpush1.msra.mxu0 0.0
    %117 = vmatprep.subr.mxu0 0.0
    %118 = vmatpush1.msra.mxu0 0.0
    %119 = vmatprep.subr.mxu0 0.0
    %120 = vmatpush1.msra.mxu0 0.0
    %121 = vmatprep.subr.mxu0 0.0
    %122 = vmatpush1.msra.mxu0 0.0
    %123 = vmatprep.subr.mxu0 0.0
    %124 = vmatpush1.msra.mxu0 0.0
    %125 = vmatprep.subr.mxu0 0.0
    %126 = vmatpush1.msra.mxu0 0.0
    %127 = vmatprep.subr.mxu0 0.0
    %128 = vmatpush1.msra.mxu0 0.0
    %129 = vmatprep.subr.mxu0 0.0
    %130 = vmatpush1.msra.mxu0 0.0
    %131 = vmatprep.subr.mxu0 0.0
    %132 = vmatpush1.msra.mxu0 0.0
    %133 = vmatprep.subr.mxu0 0.0
    %134 = vmatpush1.msra.mxu0 0.0
    %135 = vmatprep.subr.mxu0 0.0
    %136 = vmatpush1.msra.mxu0 0.0
    %137 = vmatprep.subr.mxu0 0.0
    %138 = vmatpush1.msra.mxu0 0.0
    %139 = vmatprep.subr.mxu0 0.0
    %140 = vmatpush1.msra.mxu0 0.0
    %141 = vmatprep.subr.mxu0 0.0
    %142 = vmatpush1.msra.mxu0 0.0
    %143 = vmatprep.subr.mxu0 0.0
    %144 = vmatpush1.msra.mxu0 0.0
    %145 = vmatprep.subr.mxu0 0.0
    %146 = vmatpush1.msra.mxu0 0.0
    %147 = vmatprep.subr.mxu0 0.0
    %148 = vmatpush1.msra.mxu0 0.0
    %149 = vmatprep.subr.mxu0 0.0
    %150 = vmatpush1.msra.mxu0 0.0
    %151 = vmatprep.subr.mxu0 0.0
    %152 = vmatpush1.msra.mxu0 0.0
    %153 = vmatprep.subr.mxu0 0.0
    %154 = vmatpush1.msra.mxu0 0.0
    %155 = vmatprep.subr.mxu0 0.0
    %156 = vmatpush1.msra.mxu0 0.0
    %157 = vmatprep.mubr.f32.mxu0 0.0
    %158 = vmatmul.mubr.f32.gmra.mrb[0].mxu0 %v88
    %v159 = vpop.f32.mrb[0].mxu0
    %v160 = vadd.f32 %v74, %v159
    %v161 = vpop.f32.mrb[0].mxu0
    %v162 = vadd.f32 %v78, %v161
    %163 = vmatprep.mubr.f32.mxu0 0.0
    %164 = vmatmul.mubr.f32.gmra.mrb[0].mxu0 %v91
    %v165 = vpop.f32.mrb[0].mxu0
    %v166 = vadd.f32 %v74, %v165
    %v167 = vpop.f32.mrb[0].mxu0
    %v168 = vadd.f32 %v78, %v167
    %169 = vdwg.mxu0
    %170 = vmatprep.subr.mxu0 0.0
    %171 = vmatpush1.msra.mxu0 %v47
    %172 = vmatprep.subr.mxu0 0.0
    %173 = vmatpush1.msra.mxu0 %v50
    %174 = vmatprep.subr.mxu0 0.0
    %175 = vmatpush1.msra.mxu0 %v53
    %176 = vmatprep.subr.mxu0 0.0
    %177 = vmatpush1.msra.mxu0 %v56
    %178 = vmatprep.subr.mxu0 0.0
    %179 = vmatpush1.msra.mxu0 %v59
    %180 = vmatprep.subr.mxu0 0.0
    %181 = vmatpush1.msra.mxu0 %v62
    %182 = vmatprep.subr.mxu0 0.0
    %183 = vmatpush1.msra.mxu0 %v65
    %184 = vmatprep.subr.mxu0 0.0
    %185 = vmatpush1.msra.mxu0 %v68
    %186 = vmatprep.subr.mxu0 0.0
    %187 = vmatpush1.msra.mxu0 0.0
    %188 = vmatprep.subr.mxu0 0.0
    %189 = vmatpush1.msra.mxu0 0.0
    %190 = vmatprep.subr.mxu0 0.0
    %191 = vmatpush1.msra.mxu0 0.0
    %192 = vmatprep.subr.mxu0 0.0
    %193 = vmatpush1.msra.mxu0 0.0
    %194 = vmatprep.subr.mxu0 0.0
    %195 = vmatpush1.msra.mxu0 0.0
    %196 = vmatprep.subr.mxu0 0.0
    %197 = vmatpush1.msra.mxu0 0.0
    %198 = vmatprep.subr.mxu0 0.0
    %199 = vmatpush1.msra.mxu0 0.0
    %200 = vmatprep.subr.mxu0 0.0
    %201 = vmatpush1.msra.mxu0 0.0
    %202 = vmatprep.subr.mxu0 0.0
    %203 = vmatpush1.msra.mxu0 0.0
    %204 = vmatprep.subr.mxu0 0.0
    %205 = vmatpush1.msra.mxu0 0.0
    %206 = vmatprep.subr.mxu0 0.0
    %207 = vmatpush1.msra.mxu0 0.0
    %208 = vmatprep.subr.mxu0 0.0
    %209 = vmatpush1.msra.mxu0 0.0
    %210 = vmatprep.subr.mxu0 0.0
    %211 = vmatpush1.msra.mxu0 0.0
    %212 = vmatprep.subr.mxu0 0.0
    %213 = vmatpush1.msra.mxu0 0.0
    %214 = vmatprep.subr.mxu0 0.0
    %215 = vmatpush1.msra.mxu0 0.0
    %216 = vmatprep.subr.mxu0 0.0
    %217 = vmatpush1.msra.mxu0 0.0
    %218 = vmatprep.subr.mxu0 0.0
    %219 = vmatpush1.msra.mxu0 0.0
    %220 = vmatprep.subr.mxu0 0.0
    %221 = vmatpush1.msra.mxu0 0.0
    %222 = vmatprep.subr.mxu0 0.0
    %223 = vmatpush1.msra.mxu0 0.0
    %224 = vmatprep.subr.mxu0 0.0
    %225 = vmatpush1.msra.mxu0 0.0
    %226 = vmatprep.subr.mxu0 0.0
    %227 = vmatpush1.msra.mxu0 0.0
    %228 = vmatprep.subr.mxu0 0.0
    %229 = vmatpush1.msra.mxu0 0.0
    %230 = vmatprep.subr.mxu0 0.0
    %231 = vmatpush1.msra.mxu0 0.0
    %232 = vmatprep.subr.mxu0 0.0
    %233 = vmatpush1.msra.mxu0 0.0
    %234 = vmatprep.mubr.f32.mxu0 0.0
    %235 = vmatmul.mubr.f32.gmra.mrb[0].mxu0 %v88
    %v236 = vpop.f32.mrb[0].mxu0
    %v237 = vadd.f32 %v82, %v236
    %v238 = vpop.f32.mrb[0].mxu0
    %239 = vmatprep.mubr.f32.mxu0 0.0
    %240 = vmatmul.mubr.f32.gmra.mrb[0].mxu0 %v91
    %v241 = vpop.f32.mrb[0].mxu0
    %v242 = vadd.f32 %v82, %v241
    %v243 = vpop.f32.mrb[0].mxu0
    %244 = vdwg.mxu0
    %v245 = vmax.f32 %v237, 0.0
    %v246 = vmax.f32 %v242, 0.0
    %v247 = vmul.f32 %v160, %v162
    %v248 = vmul.f32 %v166, %v168
    %vm249 = vcmask 130048
    %v250 = vsel %vm249, %v247, 0.0
    %251 = vadd.xlane.f32.xlu0 %v250
    %v252 = vpop.xlane.xlu0 %251
    %v253 = vsel %vm249, %v248, 0.0
    %254 = vadd.xlane.f32.xlu0 %v253
    %v255 = vpop.xlane.xlu0 %254
    %v256 = vmul.f32 %v252, 0.25
    %v257 = vmul.f32 %v255, 0.25
    %260 = vrot.lane.b32.xlu0 %v162, 112
    %v261 = vpop.permute.xlu0 %260
    %262 = vrot.lane.b32.xlu0 %v168, 112
    %v263 = vpop.permute.xlu0 %262
    %v266 = vmul.f32 %v160, %v261
    %v267 = vmul.f32 %v166, %v263
    %v268 = vsel %vm249, %v266, 0.0
    %269 = vadd.xlane.f32.xlu0 %v268
    %v270 = vpop.xlane.xlu0 %269
    %v271 = vsel %vm249, %v267, 0.0
    %272 = vadd.xlane.f32.xlu0 %v271
    %v273 = vpop.xlane.xlu0 %272
    %v274 = vmul.f32 %v270, 0.25
    %v275 = vmul.f32 %v273, 0.25
    %276 = vrot.lane.b32.xlu0 %v162, 96
    %v277 = vpop.permute.xlu0 %276
    %278 = vrot.lane.b32.xlu0 %v168, 96
    %v279 = vpop.permute.xlu0 %278
    %v282 = vmul.f32 %v160, %v277
    %v283 = vmul.f32 %v166, %v279
    %v284 = vsel %vm249, %v282, 0.0
    %285 = vadd.xlane.f32.xlu0 %v284
    %v286 = vpop.xlane.xlu0 %285
    %v287 = vsel %vm249, %v283, 0.0
    %288 = vadd.xlane.f32.xlu0 %v287
    %v289 = vpop.xlane.xlu0 %288
    %v290 = vmul.f32 %v286, 0.25
    %v291 = vmul.f32 %v289, 0.25
    %292 = vrot.lane.b32.xlu0 %v162, 16
    %v293 = vpop.permute.xlu0 %292
    %294 = vrot.lane.b32.xlu0 %v168, 16
    %v295 = vpop.permute.xlu0 %294
    %v298 = vmul.f32 %v160, %v293
    %v299 = vmul.f32 %v166, %v295
    %302 = vrot.lane.b32.xlu0 %v298, 112
    %v303 = vpop.permute.xlu0 %302
    %304 = vrot.lane.b32.xlu0 %v299, 112
    %v305 = vpop.permute.xlu0 %304
    %v308 = vsel %vm249, %v303, 0.0
    %309 = vadd.xlane.f32.xlu0 %v308
    %v310 = vpop.xlane.xlu0 %309
    %v311 = vsel %vm249, %v305, 0.0
    %312 = vadd.xlane.f32.xlu0 %v311
    %v313 = vpop.xlane.xlu0 %312
    %v314 = vmul.f32 %v310, 0.25
    %v315 = vmul.f32 %v313, 0.25
    %318 = vrot.lane.b32.xlu0 %v247, 112
    %v319 = vpop.permute.xlu0 %318
    %320 = vrot.lane.b32.xlu0 %v248, 112
    %v321 = vpop.permute.xlu0 %320
    %v324 = vsel %vm249, %v319, 0.0
    %325 = vadd.xlane.f32.xlu0 %v324
    %v326 = vpop.xlane.xlu0 %325
    %v327 = vsel %vm249, %v321, 0.0
    %328 = vadd.xlane.f32.xlu0 %v327
    %v329 = vpop.xlane.xlu0 %328
    %v330 = vmul.f32 %v326, 0.25
    %v331 = vmul.f32 %v329, 0.25
    %334 = vrot.lane.b32.xlu0 %v266, 112
    %v335 = vpop.permute.xlu0 %334
    %336 = vrot.lane.b32.xlu0 %v267, 112
    %v337 = vpop.permute.xlu0 %336
    %v340 = vsel %vm249, %v335, 0.0
    %341 = vadd.xlane.f32.xlu0 %v340
    %v342 = vpop.xlane.xlu0 %341
    %v343 = vsel %vm249, %v337, 0.0
    %344 = vadd.xlane.f32.xlu0 %v343
    %v345 = vpop.xlane.xlu0 %344
    %v346 = vmul.f32 %v342, 0.25
    %v347 = vmul.f32 %v345, 0.25
    %348 = vrot.lane.b32.xlu0 %v162, 32
    %v349 = vpop.permute.xlu0 %348
    %350 = vrot.lane.b32.xlu0 %v168, 32
    %v351 = vpop.permute.xlu0 %350
    %v354 = vmul.f32 %v160, %v349
    %v355 = vmul.f32 %v166, %v351
    %358 = vrot.lane.b32.xlu0 %v354, 96
    %v359 = vpop.permute.xlu0 %358
    %360 = vrot.lane.b32.xlu0 %v355, 96
    %v361 = vpop.permute.xlu0 %360
    %v364 = vsel %vm249, %v359, 0.0
    %365 = vadd.xlane.f32.xlu0 %v364
    %v366 = vpop.xlane.xlu0 %365
    %v367 = vsel %vm249, %v361, 0.0
    %368 = vadd.xlane.f32.xlu0 %v367
    %v369 = vpop.xlane.xlu0 %368
    %v370 = vmul.f32 %v366, 0.25
    %v371 = vmul.f32 %v369, 0.25
    %372 = vrot.lane.b32.xlu0 %v298, 96
    %v373 = vpop.permute.xlu0 %372
    %374 = vrot.lane.b32.xlu0 %v299, 96
    %v375 = vpop.permute.xlu0 %374
    %v378 = vsel %vm249, %v373, 0.0
    %379 = vadd.xlane.f32.xlu0 %v378
    %v380 = vpop.xlane.xlu0 %379
    %v381 = vsel %vm249, %v375, 0.0
    %382 = vadd.xlane.f32.xlu0 %v381
    %v383 = vpop.xlane.xlu0 %382
    %v384 = vmul.f32 %v380, 0.25
    %v385 = vmul.f32 %v383, 0.25
    %386 = vrot.lane.b32.xlu0 %v247, 96
    %v387 = vpop.permute.xlu0 %386
    %388 = vrot.lane.b32.xlu0 %v248, 96
    %v389 = vpop.permute.xlu0 %388
    %v392 = vsel %vm249, %v387, 0.0
    %393 = vadd.xlane.f32.xlu0 %v392
    %v394 = vpop.xlane.xlu0 %393
    %v395 = vsel %vm249, %v389, 0.0
    %396 = vadd.xlane.f32.xlu0 %v395
    %v397 = vpop.xlane.xlu0 %396
    %v398 = vmul.f32 %v394, 0.25
    %v399 = vmul.f32 %v397, 0.25
    %v400 = vmax.f32 %v256, %v274
    %v401 = vmax.f32 %v257, %v275
    %v402 = vmax.f32 %v400, %v290
    %v403 = vmax.f32 %v401, %v291
    %v404 = vsub.f32 %v256, %v402
    %v405 = vsub.f32 %v257, %v403
    %v406 = vmul.f32 %v404, 1.442695
    %v407 = vpow.pop %v406
    %v408 = vmul.f32 %v405, 1.442695
    %v409 = vpow.pop %v408
    %v410 = vsub.f32 %v274, %v402
    %v411 = vsub.f32 %v275, %v403
    %v412 = vmul.f32 %v410, 1.442695
    %v413 = vpow.pop %v412
    %v414 = vmul.f32 %v411, 1.442695
    %v415 = vpow.pop %v414
    %v416 = vsub.f32 %v290, %v402
    %v417 = vsub.f32 %v291, %v403
    %v418 = vmul.f32 %v416, 1.442695
    %v419 = vpow.pop %v418
    %v420 = vmul.f32 %v417, 1.442695
    %v421 = vpow.pop %v420
    %v422 = vadd.f32 %v407, %v413
    %v423 = vadd.f32 %v409, %v415
    %v424 = vadd.f32 %v422, %v419
    %v425 = vadd.f32 %v423, %v421
    %v426 = vrcp.pop %v424
    %v427 = vrcp.pop %v425
    %v428 = vmul.f32 %v407, %v426
    %v429 = vmul.f32 %v409, %v427
    %v430 = vmul.f32 %v428, %v245
    %v431 = vmul.f32 %v429, %v246
    %v432 = vmul.f32 %v413, %v426
    %v433 = vmul.f32 %v415, %v427
    %v434 = vmul.f32 %v432, %v245
    %v435 = vmul.f32 %v433, %v246
    %438 = vrot.lane.b32.xlu0 %v434, 112
    %v439 = vpop.permute.xlu0 %438
    %440 = vrot.lane.b32.xlu0 %v435, 112
    %v441 = vpop.permute.xlu0 %440
    %v444 = vadd.f32 %v430, %v439
    %v445 = vadd.f32 %v431, %v441
    %v446 = vmul.f32 %v419, %v426
    %v447 = vmul.f32 %v421, %v427
    %v448 = vmul.f32 %v446, %v245
    %v449 = vmul.f32 %v447, %v246
    %452 = vrot.lane.b32.xlu0 %v448, 96
    %v453 = vpop.permute.xlu0 %452
    %454 = vrot.lane.b32.xlu0 %v449, 96
    %v455 = vpop.permute.xlu0 %454
    %v458 = vadd.f32 %v444, %v453
    %v459 = vadd.f32 %v445, %v455
    %v460 = vmax.f32 %v314, %v330
    %v461 = vmax.f32 %v315, %v331
    %v462 = vmax.f32 %v460, %v346
    %v463 = vmax.f32 %v461, %v347
    %v464 = vsub.f32 %v314, %v462
    %v465 = vsub.f32 %v315, %v463
    %v466 = vmul.f32 %v464, 1.442695
    %v467 = vpow.pop %v466
    %v468 = vmul.f32 %v465, 1.442695
    %v469 = vpow.pop %v468
    %v470 = vsub.f32 %v330, %v462
    %v471 = vsub.f32 %v331, %v463
    %v472 = vmul.f32 %v470, 1.442695
    %v473 = vpow.pop %v472
    %v474 = vmul.f32 %v471, 1.442695
    %v475 = vpow.pop %v474
    %v476 = vsub.f32 %v346, %v462
    %v477 = vsub.f32 %v347, %v463
    %v478 = vmul.f32 %v476, 1.442695
    %v479 = vpow.pop %v478
    %v480 = vmul.f32 %v477, 1.442695
    %v481 = vpow.pop %v480
    %v482 = vadd.f32 %v467, %v473
    %v483 = vadd.f32 %v469, %v475
    %v484 = vadd.f32 %v482, %v479
    %v485 = vadd.f32 %v483, %v481
    %v486 = vrcp.pop %v484
    %v487 = vrcp.pop %v485
    %v488 = vmul.f32 %v467, %v486
    %v489 = vmul.f32 %v469, %v487
    %v490 = vmul.f32 %v488, %v245
    %v491 = vmul.f32 %v489, %v246
    %v492 = vmul.f32 %v473, %v486
    %v493 = vmul.f32 %v475, %v487
    %v494 = vmul.f32 %v492, %v245
    %v495 = vmul.f32 %v493, %v246
    %498 = vrot.lane.b32.xlu0 %v494, 112
    %v499 = vpop.permute.xlu0 %498
    %500 = vrot.lane.b32.xlu0 %v495, 112
    %v501 = vpop.permute.xlu0 %500
    %v504 = vadd.f32 %v490, %v499
    %v505 = vadd.f32 %v491, %v501
    %v506 = vmul.f32 %v479, %v486
    %v507 = vmul.f32 %v481, %v487
    %v508 = vmul.f32 %v506, %v245
    %v509 = vmul.f32 %v507, %v246
    %512 = vrot.lane.b32.xlu0 %v508, 96
    %v513 = vpop.permute.xlu0 %512
    %514 = vrot.lane.b32.xlu0 %v509, 96
    %v515 = vpop.permute.xlu0 %514
    %v518 = vadd.f32 %v504, %v513
    %v519 = vadd.f32 %v505, %v515
    %v520 = vmax.f32 %v370, %v384
    %v521 = vmax.f32 %v371, %v385
    %v522 = vmax.f32 %v520, %v398
    %v523 = vmax.f32 %v521, %v399
    %v524 = vsub.f32 %v370, %v522
    %v525 = vsub.f32 %v371, %v523
    %v526 = vmul.f32 %v524, 1.442695
    %v527 = vpow.pop %v526
    %v528 = vmul.f32 %v525, 1.442695
    %v529 = vpow.pop %v528
    %v530 = vsub.f32 %v384, %v522
    %v531 = vsub.f32 %v385, %v523
    %v532 = vmul.f32 %v530, 1.442695
    %v533 = vpow.pop %v532
    %v534 = vmul.f32 %v531, 1.442695
    %v535 = vpow.pop %v534
    %v536 = vsub.f32 %v398, %v522
    %v537 = vsub.f32 %v399, %v523
    %v538 = vmul.f32 %v536, 1.442695
    %v539 = vpow.pop %v538
    %v540 = vmul.f32 %v537, 1.442695
    %v541 = vpow.pop %v540
    %v542 = vadd.f32 %v527, %v533
    %v543 = vadd.f32 %v529, %v535
    %v544 = vadd.f32 %v542, %v539
    %v545 = vadd.f32 %v543, %v541
    %v546 = vrcp.pop %v544
    %v547 = vrcp.pop %v545
    %v548 = vmul.f32 %v527, %v546
    %v549 = vmul.f32 %v529, %v547
    %v550 = vmul.f32 %v548, %v245
    %v551 = vmul.f32 %v549, %v246
    %v552 = vmul.f32 %v533, %v546
    %v553 = vmul.f32 %v535, %v547
    %v554 = vmul.f32 %v552, %v245
    %v555 = vmul.f32 %v553, %v246
    %558 = vrot.lane.b32.xlu0 %v554, 112
    %v559 = vpop.permute.xlu0 %558
    %560 = vrot.lane.b32.xlu0 %v555, 112
    %v561 = vpop.permute.xlu0 %560
    %v564 = vadd.f32 %v550, %v559
    %v565 = vadd.f32 %v551, %v561
    %v566 = vmul.f32 %v539, %v546
    %v567 = vmul.f32 %v541, %v547
    %v568 = vmul.f32 %v566, %v245
    %v569 = vmul.f32 %v567, %v246
    %572 = vrot.lane.b32.xlu0 %v568, 96
    %v573 = vpop.permute.xlu0 %572
    %574 = vrot.lane.b32.xlu0 %v569, 96
    %v575 = vpop.permute.xlu0 %574
    %v578 = vadd.f32 %v564, %v573
    %v579 = vadd.f32 %v565, %v575
    %v580 = vadd.f32 %v458, %v518
    %v581 = vadd.f32 %v459, %v519
    %v582 = vadd.f32 %v580, %v578
    %v583 = vadd.f32 %v581, %v579
    %v584 = vmul.f32 %v582, 0.33333334
    %v585 = vmul.f32 %v583, 0.33333334
    %586 = vst.msk [vmem:[#allocation7] sm:$0xff] %vm249, %v584
    %587 = vst.msk [vmem:[#allocation7 + $0x8] sm:$0xff] %vm249, %v585
    // Predicated region
    $region22: #{tpu_custom_call.1} parent=1 // pred_check
      _
    $region23: #{tpu_custom_call.1} parent=1 // pred_check_branch
      %589 = sbr.rel (0) target = $region25
    $region24: #{tpu_custom_call.1} parent=1 // pred_region
      %s591 = ssub.s32 256, 256
      %592 = vsyncadd [#allocation4], %s591
      %s593 = sshll.u32 [#allocation7], 4
      %s594 = int_to_ptr.vmem [resolvable:$true] %s593
      %599 = dma.vmem_to_hbm [thread:$0]  %s594, 256, %s3, [#allocation4], 128, 128, 8
    $region25: #{tpu_custom_call.1} parent=1 // pred_fallthru
      _
    // Predicated region
    $region26: #{tpu_custom_call.1} parent=1 // pred_check
      _
    $region27: #{tpu_custom_call.1} parent=1 // pred_check_branch
      %601 = sbr.rel (0) target = $region29
    $region28: #{tpu_custom_call.1} parent=1 // pred_region
      %602 = dma.done [#allocation4], 256
    $region29: #{tpu_custom_call.1} parent=1 // pred_fallthru
      _
    %603 = vsyncpa [#allocation3], 1
    %604 = vsyncpa [#allocation6], 1
    %605 = vsyncpa [#allocation4], 1

</llo_original>
